<compile_context>
chip_gen: v5e
topology: v5e:2x2
jax: 0.10.0
libtpu: 0.0.40
codegen_flags: <defaults>
</compile_context>

<pallas_src>
import functools

import jax
import jax.numpy as jnp
from jax.experimental import pallas as pl
from jax.experimental.pallas import tpu as pltpu


# ------------------------------------------------------------------ kernels --

def _se_fused_kernel(x_ref, w1_ref, w2_ref, wc_ref, bc_ref, o_ref, *, inv_hw):
    """Single-pass: spatial mean -> cSE MLP -> sSE gate -> fused apply.

    x_ref/o_ref: (1, C, HW); w1_ref: (hidden, C); w2_ref: (C, hidden);
    wc_ref: (C, 1); bc_ref: (1, 1) scalar in SMEM.
    """
    x = x_ref[0]                                                     # (C, HW)
    # Per-channel mean accumulated in f32 without materializing an upcast copy.
    mean = jnp.sum(x, axis=1, keepdims=True, dtype=jnp.float32) * inv_hw   # (C,1)
    # cSE squeeze/excite MLP (tiny; MXU has plenty of slack in this HBM-bound kernel).
    y1 = jnp.dot(w1_ref[...], mean, preferred_element_type=jnp.float32)    # (h,1)
    y1 = jnp.where(y1 >= 0, y1, 0.01 * y1)                                 # LeakyReLU(0.01)
    y2 = jnp.dot(w2_ref[...], y1, preferred_element_type=jnp.float32)      # (C,1)
    y_ch = jax.nn.sigmoid(y2)                                              # (C,1)
    # sSE 1x1 conv (C -> 1): VPU broadcast-mul + sublane reduce (no N=1 matmul).
    s = jnp.sum(x * wc_ref[...], axis=0, keepdims=True,
                dtype=jnp.float32) + bc_ref[0, 0]                          # (1,HW)
    y_sp = jax.nn.sigmoid(s)
    # x*y_ch + x*y_sp == x * (y_ch + y_sp): one fused, lane-dense store.
    o_ref[0] = (x * (y_ch + y_sp)).astype(o_ref.dtype)


def _se_sum_kernel(x_ref, sum_ref):
    """Tiled pass 1: per-(batch, HW-split) partial channel sums.

    x_ref: (1, C, T); sum_ref: (1, C, 1) f32, revisited across the innermost
    (arbitrary) grid axis and used directly as the accumulator.
    """
    @pl.when(pl.program_id(2) == 0)
    def _():
        sum_ref[...] = jnp.zeros_like(sum_ref)

    sum_ref[...] += jnp.sum(x_ref[...], axis=2, keepdims=True,
                            dtype=jnp.float32)


def _se_apply_kernel(x_ref, gate_ref, wc_ref, bc_ref, o_ref):
    """Tiled pass 2: sSE spatial gate + fused apply.

    x_ref/o_ref: (1, C, T); gate_ref: (1, C, 1); wc_ref: (C, 1);
    bc_ref: (1, 1) scalar in SMEM.
    """
    x = x_ref[0]                                                     # (C, T)
    y_ch = gate_ref[0]                                               # (C, 1)
    s = jnp.sum(x * wc_ref[...], axis=0, keepdims=True,
                dtype=jnp.float32) + bc_ref[0, 0]                    # (1, T)
    y_sp = jax.nn.sigmoid(s)
    o_ref[0] = (x * (y_ch + y_sp)).astype(o_ref.dtype)


# ------------------------------------------------------------------ helpers --

def _vmem_params():
    """Per-generation (budget, vmem_limit) in bytes.

    budget ~ cap/4 (32 MiB on v5e/v6e's 128 MiB, 16 MiB on v7x's 64 MiB);
    vmem_limit ~ cap/2 is passed to the compiler for pipelining headroom.
    Falls back to conservative values if the query fails.
    """
    cap = 64 << 20  # conservative default, safe on every generation
    try:
        info = pltpu.get_tpu_info()
        cap = int(getattr(info, "vmem_capacity_bytes", 0)) or cap
    except Exception:
        pass
    budget = min(cap // 4, 32 << 20)
    limit = min(cap // 2, 64 << 20)
    return budget, limit


def _pick_hw_tile(hw, c, itemsize, budget_bytes):
    """Largest multiple-of-128 divisor of hw (hw itself a multiple of 128)
    whose per-step footprint (x block + out block, each double-buffered,
    ~4*c*t*itemsize) stays inside the VMEM budget."""
    max_t = budget_bytes // max(4 * c * itemsize, 1)
    max_t = max((max_t // 128) * 128, 128)
    best = 128
    t = 128
    limit = min(hw, max_t)
    while t <= limit:
        if hw % t == 0:
            best = t
        t += 128
    return best


# ------------------------------------------------------------------ wrapper --

def se_block(x_nchw, w1, w2, wc, bc, *, vmem_budget_bytes=None):
    """SEBlock forward (cSE + sSE). x_nchw: (B, C, H, W).

    w1: (C//r, C)  Linear(C, C//r, bias=False) weight
    w2: (C, C//r)  Linear(C//r, C, bias=False) weight
    wc: (1, C, 1, 1) Conv2d(C, 1, 1) weight;  bc: (1,) its bias.
    """
    B, C, H, W = x_nchw.shape
    HW = H * W
    hidden = w1.shape[0]
    assert hidden >= 1, "channel must be >= reduction"

    budget_default, vmem_limit = _vmem_params()
    budget = vmem_budget_bytes if vmem_budget_bytes is not None else budget_default

    x = x_nchw.reshape(B, C, HW)        # NCHW-native: lanes = HW, sublanes = C
    wc_col = wc.reshape(C, 1)           # 1x1-conv weight as a (C, 1) column
    bc_s = bc.reshape(1, 1)             # conv bias -> SMEM scalar
    itemsize = x.dtype.itemsize

    # ---------------- fast path: single fused pass (2 HBM passes of x) ------
    slab_bytes = C * HW * itemsize
    small_bytes = (2 * hidden * C + 2 * C) * 4 + 4096    # weights + slack
    if 4 * slab_bytes + small_bytes <= budget:
        out = pl.pallas_call(
            functools.partial(_se_fused_kernel, inv_hw=1.0 / HW),
            out_shape=jax.ShapeDtypeStruct((B, C, HW), x.dtype),
            grid=(B,),
            in_specs=[
                pl.BlockSpec((1, C, HW), lambda b: (b, 0, 0)),
                pl.BlockSpec((hidden, C), lambda b: (0, 0)),
                pl.BlockSpec((C, hidden), lambda b: (0, 0)),
                pl.BlockSpec((C, 1), lambda b: (0, 0)),
                pl.BlockSpec(memory_space=pltpu.MemorySpace.SMEM),
            ],
            out_specs=pl.BlockSpec((1, C, HW), lambda b: (b, 0, 0)),
            compiler_params=pltpu.CompilerParams(
                dimension_semantics=("parallel",),
                vmem_limit_bytes=vmem_limit),
        )(x, w1, w2, wc_col, bc_s)
        return out.reshape(B, C, H, W)

    # ---------------- fallback: two tiled passes -----------------------------
    # Pad HW to a multiple of 128 so blocks stay lane-dense and budget-bounded
    # (zeros don't change the channel sums; padded outputs are sliced off).
    HW_pad = ((HW + 127) // 128) * 128
    xp = x if HW_pad == HW else jnp.pad(x, ((0, 0), (0, 0), (0, HW_pad - HW)))

    t = _pick_hw_tile(HW_pad, C, itemsize, budget)
    n_t = HW_pad // t
    # Split HW tiles in two so both v7x TensorCores get work even at B == 1.
    n_splits = 2 if (n_t >= 2 and n_t % 2 == 0) else 1
    tps = n_t // n_splits

    # pass 1: partial channel sums (MLP hoisted out of the kernel).
    psum = pl.pallas_call(
        _se_sum_kernel,
        out_shape=jax.ShapeDtypeStruct((B * n_splits, C, 1), jnp.float32),
        grid=(B, n_splits, tps),
        in_specs=[pl.BlockSpec((1, C, t),
                               lambda b, s, i: (b, 0, s * tps + i))],
        out_specs=pl.BlockSpec((1, C, 1),
                               lambda b, s, i: (b * n_splits + s, 0, 0)),
        compiler_params=pltpu.CompilerParams(
            dimension_semantics=("parallel", "parallel", "arbitrary"),
            vmem_limit_bytes=vmem_limit),
    )(xp)

    # cSE MLP in plain JAX: combine partial sums, mean over the TRUE HW,
    # Linear -> LeakyReLU -> Linear -> Sigmoid, as one batched matmul.
    sums = psum.reshape(B, n_splits, C).sum(axis=1)                  # (B, C)
    mean = sums * (1.0 / HW)
    y = mean @ w1.T
    y = jnp.where(y >= 0, y, 0.01 * y)
    gate = jax.nn.sigmoid(y @ w2.T).astype(jnp.float32).reshape(B, C, 1)

    # pass 2: sSE gate + fused apply (single lane-dense store per tile).
    # TODO(synk): if the caller can donate x, alias it via input_output_aliases={0: 0}.
    out = pl.pallas_call(
        _se_apply_kernel,
        out_shape=jax.ShapeDtypeStruct((B, C, HW_pad), x.dtype),
        grid=(B, n_t),
        in_specs=[
            pl.BlockSpec((1, C, t), lambda b, i: (b, 0, i)),
            pl.BlockSpec((1, C, 1), lambda b, i: (b, 0, 0)),
            pl.BlockSpec((C, 1), lambda b, i: (0, 0)),
            pl.BlockSpec(memory_space=pltpu.MemorySpace.SMEM),
        ],
        out_specs=pl.BlockSpec((1, C, t), lambda b, i: (b, 0, i)),
        compiler_params=pltpu.CompilerParams(
            dimension_semantics=("parallel", "parallel"),
            vmem_limit_bytes=vmem_limit),
    )(xp, gate, wc_col, bc_s)

    if HW_pad != HW:
        out = out[:, :, :HW]
    return out.reshape(B, C, H, W)


def se_block_ref(x, w1, w2, wc, bc):
    """Pure-JAX reference matching the PyTorch SEBlock forward."""
    B, C, H, W = x.shape
    # cSE
    y = jnp.mean(x, axis=(2, 3))                        # (B, C)
    y = y @ w1.T
    y = jnp.where(y >= 0, y, 0.01 * y)                  # LeakyReLU(0.01)
    y = jax.nn.sigmoid(y @ w2.T)                        # (B, C)
    cse = x * y[:, :, None, None]
    # sSE
    s = jnp.einsum("bchw,c->bhw", x, wc.reshape(C)) + bc[0]
    sse = x * jax.nn.sigmoid(s)[:, None, :, :]
    return cse + sse


if __name__ == "__main__":
    # channel=32, reduction=16 -> hidden=2 (channels=4 would give hidden=0, invalid)
    B, C, H, W = 2, 32, 16, 16
    reduction = 16
    hidden = C // reduction

    key = jax.random.PRNGKey(0)
    k1, k2, k3, k4, kx = jax.random.split(key, 5)
    # Deterministic synthetic parameters (shapes from the PyTorch __init__).
    w1 = jax.random.normal(k1, (hidden, C), jnp.float32) * 0.2   # Linear(C, C//r), no bias
    w2 = jax.random.normal(k2, (C, hidden), jnp.float32) * 0.2   # Linear(C//r, C), no bias
    wc = jax.random.normal(k3, (1, C, 1, 1), jnp.float32) * 0.2  # Conv2d(C, 1, 1) weight
    bc = jax.random.normal(k4, (1,), jnp.float32) * 0.2          # Conv2d(C, 1, 1) bias

    # 1) default path: per-batch slab fits VMEM -> single fused pass.
    x = jax.random.normal(kx, (B, C, H, W), jnp.float32)
    out = jax.block_until_ready(se_block(x, w1, w2, wc, bc))
    ref = se_block_ref(x, w1, w2, wc, bc)
    assert out.shape == ref.shape and out.dtype == ref.dtype
    assert jnp.allclose(out, ref, atol=1e-5, rtol=1e-5), "fused path mismatch"

    # 2) force the two-pass tiled fallback (128-divisible HW) with a tiny budget.
    x2 = jax.random.normal(kx, (2, C, 32, 32), jnp.float32)
    out2 = jax.block_until_ready(
        se_block(x2, w1, w2, wc, bc, vmem_budget_bytes=64 << 10))
    ref2 = se_block_ref(x2, w1, w2, wc, bc)
    assert jnp.allclose(out2, ref2, atol=1e-5, rtol=1e-5), "tiled path mismatch"

    # 3) two-pass fallback with HW not divisible by 128 (zero-padding path).
    x3 = jax.random.normal(kx, (1, C, 20, 20), jnp.float32)
    out3 = jax.block_until_ready(
        se_block(x3, w1, w2, wc, bc, vmem_budget_bytes=32 << 10))
    ref3 = se_block_ref(x3, w1, w2, wc, bc)
    assert jnp.allclose(out3, ref3, atol=1e-5, rtol=1e-5), "padded path mismatch"

    print("KERNEL_OK")
</pallas_src>

<mosaic_0001>
module attributes {stable_mosaic.version = 11 : i64} {
  func.func @_se_fused_kernel(%arg0: i32, %arg1: memref<1x32x256xf32, #tpu.memory_space<vmem>>, %arg2: memref<2x32xf32, #tpu.memory_space<vmem>>, %arg3: memref<32x2xf32, #tpu.memory_space<vmem>>, %arg4: memref<32x1xf32, #tpu.memory_space<vmem>>, %arg5: memref<1x1xf32, #tpu.memory_space<smem>>, %arg6: memref<1x32x256xf32, #tpu.memory_space<vmem>>) attributes {dimension_semantics = [#tpu.dimension_semantics<parallel>], iteration_bounds = array<i64: 2>, scalar_prefetch = 0 : i64, scratch_operands = 0 : i64, tpu.core_type = #tpu.core_type<tc>, window_params = [{transform_indices = @transform_0, window_bounds = array<i64: 1, 32, 256>}, {pipeline_mode = #tpu.pipeline_mode<synchronous>, transform_indices = @transform_1, window_bounds = array<i64: 2, 32>}, {pipeline_mode = #tpu.pipeline_mode<synchronous>, transform_indices = @transform_2, window_bounds = array<i64: 32, 2>}, {pipeline_mode = #tpu.pipeline_mode<synchronous>, transform_indices = @transform_3, window_bounds = array<i64: 32, 1>}, {transform_indices = @transform_4, window_bounds = array<i64: 1, 1>}, {transform_indices = @transform_5, window_bounds = array<i64: 1, 32, 256>}]} {
    %c0 = arith.constant 0 : index
    %c0_0 = arith.constant 0 : index
    %c0_1 = arith.constant 0 : index
    %0 = vector.load %arg1[%c0, %c0_0, %c0_1] : memref<1x32x256xf32, #tpu.memory_space<vmem>>, vector<1x32x256xf32>
    %1 = vector.shape_cast %0 : vector<1x32x256xf32> to vector<32x256xf32>
    %cst = arith.constant dense<0.000000e+00> : vector<32xf32>
    %2 = vector.multi_reduction <add>, %1, %cst [1] : vector<32x256xf32> to vector<32xf32>
    %3 = vector.shape_cast %2 : vector<32xf32> to vector<32x1xf32>
    %cst_2 = arith.constant 3.906250e-03 : f32
    %4 = vector.broadcast %cst_2 : f32 to vector<32x1xf32>
    %5 = arith.mulf %3, %4 : vector<32x1xf32>
    %c0_3 = arith.constant 0 : index
    %c0_4 = arith.constant 0 : index
    %6 = vector.load %arg2[%c0_3, %c0_4] : memref<2x32xf32, #tpu.memory_space<vmem>>, vector<2x32xf32>
    %cst_5 = arith.constant dense<0.000000e+00> : vector<2x1xf32>
    %7 = tpu.matmul %6, %5, %cst_5 {dimension_numbers = #tpu.dot_dimension_numbers<[1], [0], [0], [1], [0, 0, 1, 1], [], []>} : vector<2x32xf32>, vector<32x1xf32>, vector<2x1xf32> -> vector<2x1xf32>
    %cst_6 = arith.constant 0.000000e+00 : f32
    %8 = vector.broadcast %cst_6 : f32 to vector<2x1xf32>
    %9 = arith.cmpf oge, %7, %8 : vector<2x1xf32>
    %cst_7 = arith.constant 0.00999999977 : f32
    %10 = vector.broadcast %cst_7 : f32 to vector<2x1xf32>
    %11 = arith.mulf %10, %7 : vector<2x1xf32>
    %12 = arith.select %9, %7, %11 : vector<2x1xi1>, vector<2x1xf32>
    %c0_8 = arith.constant 0 : index
    %c0_9 = arith.constant 0 : index
    %13 = vector.load %arg3[%c0_8, %c0_9] : memref<32x2xf32, #tpu.memory_space<vmem>>, vector<32x2xf32>
    %cst_10 = arith.constant dense<0.000000e+00> : vector<32x1xf32>
    %14 = tpu.matmul %13, %12, %cst_10 {dimension_numbers = #tpu.dot_dimension_numbers<[1], [0], [0], [1], [0, 0, 1, 1], [], []>} : vector<32x2xf32>, vector<2x1xf32>, vector<32x1xf32> -> vector<32x1xf32>
    %15 = arith.negf %14 : vector<32x1xf32>
    %16 = math.exp %15 : vector<32x1xf32>
    %cst_11 = arith.constant 1.000000e+00 : f32
    %17 = vector.broadcast %cst_11 : f32 to vector<32x1xf32>
    %18 = arith.addf %17, %16 : vector<32x1xf32>
    %19 = arith.divf %17, %18 : vector<32x1xf32>
    %c0_12 = arith.constant 0 : index
    %c0_13 = arith.constant 0 : index
    %20 = vector.load %arg4[%c0_12, %c0_13] : memref<32x1xf32, #tpu.memory_space<vmem>>, vector<32x1xf32>
    %21 = vector.broadcast %20 : vector<32x1xf32> to vector<32x256xf32>
    %22 = arith.mulf %1, %21 : vector<32x256xf32>
    %cst_14 = arith.constant dense<0.000000e+00> : vector<256xf32>
    %23 = vector.multi_reduction <add>, %22, %cst_14 [0] : vector<32x256xf32> to vector<256xf32>
    %24 = vector.shape_cast %23 : vector<256xf32> to vector<1x256xf32>
    %c0_15 = arith.constant 0 : index
    %c0_16 = arith.constant 0 : index
    %25 = memref.load %arg5[%c0_15, %c0_16] : memref<1x1xf32, #tpu.memory_space<smem>>
    %26 = vector.broadcast %25 : f32 to vector<1x256xf32>
    %27 = arith.addf %24, %26 : vector<1x256xf32>
    %28 = arith.negf %27 : vector<1x256xf32>
    %29 = math.exp %28 : vector<1x256xf32>
    %cst_17 = arith.constant 1.000000e+00 : f32
    %30 = vector.broadcast %cst_17 : f32 to vector<1x256xf32>
    %31 = arith.addf %30, %29 : vector<1x256xf32>
    %32 = arith.divf %30, %31 : vector<1x256xf32>
    %33 = vector.broadcast %19 : vector<32x1xf32> to vector<32x256xf32>
    %34 = vector.broadcast %32 : vector<1x256xf32> to vector<32x256xf32>
    %35 = arith.addf %33, %34 : vector<32x256xf32>
    %36 = arith.mulf %1, %35 : vector<32x256xf32>
    %c0_18 = arith.constant 0 : index
    %c0_19 = arith.constant 0 : index
    %c0_20 = arith.constant 0 : index
    %37 = vector.load %arg6[%c0_18, %c0_19, %c0_20] : memref<1x32x256xf32, #tpu.memory_space<vmem>>, vector<1x32x256xf32>
    %38 = vector.shape_cast %37 : vector<1x32x256xf32> to vector<32x256xf32>
    %39 = vector.shape_cast %36 : vector<32x256xf32> to vector<1x32x256xf32>
    tpu.vector_store %arg6[%c0_18, %c0_19, %c0_20], %39 {strides = array<i32>} : memref<1x32x256xf32, #tpu.memory_space<vmem>>, vector<1x32x256xf32>,
    return
  }
  func.func @transform_0(%arg0: i32) -> (i32, i32, i32) {
    %c0_i32 = arith.constant 0 : i32
    %c0_i32_0 = arith.constant 0 : i32
    %c0_i32_1 = arith.constant 0 : i32
    return %arg0, %c0_i32, %c0_i32_0 : i32, i32, i32
  }
  func.func @transform_1(%arg0: i32) -> (i32, i32) {
    %c0_i32 = arith.constant 0 : i32
    %c0_i32_0 = arith.constant 0 : i32
    %c0_i32_1 = arith.constant 0 : i32
    return %c0_i32, %c0_i32_0 : i32, i32
  }
  func.func @transform_2(%arg0: i32) -> (i32, i32) {
    %c0_i32 = arith.constant 0 : i32
    %c0_i32_0 = arith.constant 0 : i32
    %c0_i32_1 = arith.constant 0 : i32
    return %c0_i32, %c0_i32_0 : i32, i32
  }
  func.func @transform_3(%arg0: i32) -> (i32, i32) {
    %c0_i32 = arith.constant 0 : i32
    %c0_i32_0 = arith.constant 0 : i32
    %c0_i32_1 = arith.constant 0 : i32
    return %c0_i32, %c0_i32_0 : i32, i32
  }
  func.func @transform_4(%arg0: i32) -> (i32, i32) {
    %c0_i32 = arith.constant 0 : i32
    %c0_i32_0 = arith.constant 0 : i32
    %c0_i32_1 = arith.constant 0 : i32
    return %c0_i32, %c0_i32_0 : i32, i32
  }
  func.func @transform_5(%arg0: i32) -> (i32, i32, i32) {
    %c0_i32 = arith.constant 0 : i32
    %c0_i32_0 = arith.constant 0 : i32
    %c0_i32_1 = arith.constant 0 : i32
    return %arg0, %c0_i32, %c0_i32_0 : i32, i32, i32
  }
}

</mosaic_0001>

<llo_original>
// kernel: tpu_custom_call.1
$region0: #{tpu_custom_call.1}
  #allocation0 [shape = 'u32[]', space=smem, size = 0x4, offset = 0x4, fixed_abs, tag = 'smem constant byte address 0x4 - core index']
  #allocation1 [shape = 'u32[72,128]{1,0:T(1,128)}', space=vmem, size = 0x9000, scoped, tag = 'internal scratch']
  #allocation2 [shape = 'f32[1,1]{1,0:T(1,128)S(6)}', space=smem, size = 0x200, scoped, tag = 'scoped memory for tpu_custom_call.1']
  %s0 = inlined_call_operand.hbm [shape: f32[2,32,256], index: 0, kind: input, shape index: {}]
  %s1 = inlined_call_operand.vmem [shape: f32[2,32], index: 1, kind: input, shape index: {}]
  %s2 = inlined_call_operand.vmem [shape: f32[32,2], index: 2, kind: input, shape index: {}]
  %s3 = inlined_call_operand.vmem [shape: f32[32,1], index: 3, kind: input, shape index: {}]
  %s4 = inlined_call_operand.<no memory space> [shape: f32[1,1], index: 4, kind: input, shape index: {}]
  %s5 = inlined_call_operand.hbm [shape: f32[2,32,256], index: 5, kind: output, shape index: {}]
  %s6 = sld [smem:[#allocation0]]
  $region57: #{tpu_custom_call.1} parent=0
    _
  %s8 = ssub.s32 1, %s6
  %s9 = scalar_select 0, %s8, %s6
  %10 = sst [smem:[#allocation2]] %s4
  $region1: #{tpu_custom_call.1} parent=0
    #allocation3 [shape = 'u8[65536]{0}', space=vmem, size = 0x10000, scoped, tag = 'input window, operand 0']
    #allocation4 [shape = 's32[2]{0}', space=sflag, size = 0x8, scoped, tag = 'scoped memory for tpu_custom_call.1']
    #allocation5 [shape = 's32[2]{0}', space=sflag, size = 0x8, scoped, tag = 'scoped memory for tpu_custom_call.1']
    #allocation6 [shape = 'u8[65536]{0}', space=vmem, size = 0x10000, scoped, tag = 'output window, operand 0']
    %11 = vsyncpa [#allocation4], 0
    %s12 = scalar_lea.sflag [#allocation4], 1
    %13 = vsyncpa %s12, 0
    %14 = vsyncpa [#allocation5], 0
    %s15 = scalar_lea.sflag [#allocation5], 1
    %16 = vsyncpa %s15, 0
    loop: start=0, step=1, limit=4
    $region2: #{tpu_custom_call.1} parent=1 // loop_pre_header
      _
    $region3: #{tpu_custom_call.1} parent=1 // loop_header
      %s18 = sphi 0, %s22
      %p19 = scmp.ge.s32.totalorder %s18, 4
      %s28 = sphi 0, %s30
      %s31 = sphi 0, %s28
      %s32 = sphi 0, %s31
      %s48 = sphi 0, %s32
      %s52 = sphi 0, %s52
      %s54 = sphi 0, %s52
      %s55 = sphi 0, %s54
      %s69 = sphi 0, %s55
      %s73 = sphi 0, %s73
      %s75 = sphi 0, %s73
      %s76 = sphi 0, %s75
      %s90 = sphi 0, %s76
      %s94 = sphi 0, %s94
      %s96 = sphi 0, %s94
      %s97 = sphi 0, %s96
      %s111 = sphi 0, %s97
      %s115 = sphi 0, %s115
      %s117 = sphi 0, %s115
      %s118 = sphi 0, %s117
      %s132 = sphi 0, %s118
      %s138 = sphi 0, %s140
      %s141 = sphi 0, %s138
      %s142 = sphi 0, %s141
      %s158 = sphi 0, %s142
    $region4: #{tpu_custom_call.1} parent=1 // loop_header_branch
      %21 = sbr.rel (%p19) target = $region8
    $region5: #{tpu_custom_call.1} parent=1 // loop_body
      %s23 = ssub.s32 %s18, 1
      %s24 = ssub.s32 %s18, 2
      %s25 = sadd.s32 %s18, 1
      %s26 = ssub.s32 %s18, %s25
      %p27 = scmp.eq.s32.totalorder %s26, 0
      %s29 = sadd.s32 %s28, 1
      %s30 = scalar_select %p27, %s28, %s29
      %p33 = pneg %p27
      %p34 = scmp.eq.s32.totalorder %s18, 1
      %p35 = por %p33, %p34
      %p36 = scmp.ne.s32.totalorder %s28, %s31
      %p37 = scmp.eq.s32.totalorder %s18, 0
      %p38 = por %p36, %p37
      %p39 = scmp.ne.s32.totalorder %s28, %s31
      %p40 = scmp.eq.s32.totalorder %s23, 1
      %p41 = por %p39, %p40
      %p42 = scmp.ne.s32.totalorder %s31, %s32
      %p43 = scmp.eq.s32.totalorder %s23, 0
      %p44 = por %p42, %p43
      %p45 = scmp.ne.s32.totalorder %s31, %s32
      %p46 = scmp.eq.s32.totalorder %s24, 1
      %p47 = por %p45, %p46
      %p49 = scmp.ne.s32.totalorder %s32, %s48
      %p50 = scmp.eq.s32.totalorder %s24, 0
      %p51 = por %p49, %p50
      %s53 = sadd.s32 %s52, 1
      %p56 = scmp.eq.s32.totalorder %s18, 1
      %p57 = scmp.ne.s32.totalorder %s52, %s54
      %p58 = scmp.eq.s32.totalorder %s18, 0
      %p59 = por %p57, %p58
      %p60 = scmp.ne.s32.totalorder %s52, %s54
      %p61 = scmp.eq.s32.totalorder %s23, 1
      %p62 = por %p60, %p61
      %p63 = scmp.ne.s32.totalorder %s54, %s55
      %p64 = scmp.eq.s32.totalorder %s23, 0
      %p65 = por %p63, %p64
      %p66 = scmp.ne.s32.totalorder %s54, %s55
      %p67 = scmp.eq.s32.totalorder %s24, 1
      %p68 = por %p66, %p67
      %p70 = scmp.ne.s32.totalorder %s55, %s69
      %p71 = scmp.eq.s32.totalorder %s24, 0
      %p72 = por %p70, %p71
      %s74 = sadd.s32 %s73, 1
      %p77 = scmp.eq.s32.totalorder %s18, 1
      %p78 = scmp.ne.s32.totalorder %s73, %s75
      %p79 = scmp.eq.s32.totalorder %s18, 0
      %p80 = por %p78, %p79
      %p81 = scmp.ne.s32.totalorder %s73, %s75
      %p82 = scmp.eq.s32.totalorder %s23, 1
      %p83 = por %p81, %p82
      %p84 = scmp.ne.s32.totalorder %s75, %s76
      %p85 = scmp.eq.s32.totalorder %s23, 0
      %p86 = por %p84, %p85
      %p87 = scmp.ne.s32.totalorder %s75, %s76
      %p88 = scmp.eq.s32.totalorder %s24, 1
      %p89 = por %p87, %p88
      %p91 = scmp.ne.s32.totalorder %s76, %s90
      %p92 = scmp.eq.s32.totalorder %s24, 0
      %p93 = por %p91, %p92
      %s95 = sadd.s32 %s94, 1
      %p98 = scmp.eq.s32.totalorder %s18, 1
      %p99 = scmp.ne.s32.totalorder %s94, %s96
      %p100 = scmp.eq.s32.totalorder %s18, 0
      %p101 = por %p99, %p100
      %p102 = scmp.ne.s32.totalorder %s94, %s96
      %p103 = scmp.eq.s32.totalorder %s23, 1
      %p104 = por %p102, %p103
      %p105 = scmp.ne.s32.totalorder %s96, %s97
      %p106 = scmp.eq.s32.totalorder %s23, 0
      %p107 = por %p105, %p106
      %p108 = scmp.ne.s32.totalorder %s96, %s97
      %p109 = scmp.eq.s32.totalorder %s24, 1
      %p110 = por %p108, %p109
      %p112 = scmp.ne.s32.totalorder %s97, %s111
      %p113 = scmp.eq.s32.totalorder %s24, 0
      %p114 = por %p112, %p113
      %s116 = sadd.s32 %s115, 1
      %p119 = scmp.eq.s32.totalorder %s18, 1
      %p120 = scmp.ne.s32.totalorder %s115, %s117
      %p121 = scmp.eq.s32.totalorder %s18, 0
      %p122 = por %p120, %p121
      %p123 = scmp.ne.s32.totalorder %s115, %s117
      %p124 = scmp.eq.s32.totalorder %s23, 1
      %p125 = por %p123, %p124
      %p126 = scmp.ne.s32.totalorder %s117, %s118
      %p127 = scmp.eq.s32.totalorder %s23, 0
      %p128 = por %p126, %p127
      %p129 = scmp.ne.s32.totalorder %s117, %s118
      %p130 = scmp.eq.s32.totalorder %s24, 1
      %p131 = por %p129, %p130
      %p133 = scmp.ne.s32.totalorder %s118, %s132
      %p134 = scmp.eq.s32.totalorder %s24, 0
      %p135 = por %p133, %p134
      %s136 = ssub.s32 %s18, %s25
      %p137 = scmp.eq.s32.totalorder %s136, 0
      %s139 = sadd.s32 %s138, 1
      %s140 = scalar_select %p137, %s138, %s139
      %p143 = pneg %p137
      %p144 = scmp.eq.s32.totalorder %s18, 1
      %p145 = por %p143, %p144
      %p146 = scmp.ne.s32.totalorder %s138, %s141
      %p147 = scmp.eq.s32.totalorder %s18, 0
      %p148 = por %p146, %p147
      %p149 = scmp.ne.s32.totalorder %s138, %s141
      %p150 = scmp.eq.s32.totalorder %s23, 1
      %p151 = por %p149, %p150
      %p152 = scmp.ne.s32.totalorder %s141, %s142
      %p153 = scmp.eq.s32.totalorder %s23, 0
      %p154 = por %p152, %p153
      %p155 = scmp.ne.s32.totalorder %s141, %s142
      %p156 = scmp.eq.s32.totalorder %s24, 1
      %p157 = por %p155, %p156
      %p159 = scmp.ne.s32.totalorder %s142, %s158
      %p160 = scmp.eq.s32.totalorder %s24, 0
      %p161 = por %p159, %p160
      %p162 = scmp.le.s32.totalorder 1, %s18
      %p163 = scmp.lt.s32.totalorder %s18, 3
      %p164 = pnand %p162, %p163
      %p165 = pneg %p164
      // Predicated region
      $region9: #{tpu_custom_call.1} parent=5 // pred_check
        _
      $region10: #{tpu_custom_call.1} parent=5 // pred_check_branch
        %167 = sbr.rel (%p164) target = $region12
      $region11: #{tpu_custom_call.1} parent=5 // pred_region
        %s168 = ssub.s32 %s18, 1
        // Predicated region
        $region13: #{tpu_custom_call.1} parent=11 // pred_check
          %p169 = pneg %p65
        $region14: #{tpu_custom_call.1} parent=11 // pred_check_branch
          %171 = sbr.rel (%p169) target = $region16
        $region15: #{tpu_custom_call.1} parent=11 // pred_region
          _
        $region16: #{tpu_custom_call.1} parent=11 // pred_fallthru
          _
        // Predicated region
        $region17: #{tpu_custom_call.1} parent=11 // pred_check
          %p172 = pneg %p86
        $region18: #{tpu_custom_call.1} parent=11 // pred_check_branch
          %174 = sbr.rel (%p172) target = $region20
        $region19: #{tpu_custom_call.1} parent=11 // pred_region
          _
        $region20: #{tpu_custom_call.1} parent=11 // pred_fallthru
          _
        // Predicated region
        $region21: #{tpu_custom_call.1} parent=11 // pred_check
          %p175 = pneg %p107
        $region22: #{tpu_custom_call.1} parent=11 // pred_check_branch
          %177 = sbr.rel (%p175) target = $region24
        $region23: #{tpu_custom_call.1} parent=11 // pred_region
          _
        $region24: #{tpu_custom_call.1} parent=11 // pred_fallthru
          _
        // Predicated region
        $region25: #{tpu_custom_call.1} parent=11 // pred_check
          %p178 = pneg %p128
        $region26: #{tpu_custom_call.1} parent=11 // pred_check_branch
          %180 = sbr.rel (%p178) target = $region28
        $region27: #{tpu_custom_call.1} parent=11 // pred_region
          _
        $region28: #{tpu_custom_call.1} parent=11 // pred_fallthru
          _
      $region12: #{tpu_custom_call.1} parent=5 // pred_fallthru
        _
      %p181 = scmp.lt.s32.totalorder %s18, 2
      // Predicated region
      $region29: #{tpu_custom_call.1} parent=5 // pred_check
        %p182 = pneg %p181
      $region30: #{tpu_custom_call.1} parent=5 // pred_check_branch
        %184 = sbr.rel (%p182) target = $region32
      $region31: #{tpu_custom_call.1} parent=5 // pred_region
        // Predicated region
        $region33: #{tpu_custom_call.1} parent=31 // pred_check
          %p185 = pneg %p38
        $region34: #{tpu_custom_call.1} parent=31 // pred_check_branch
          %187 = sbr.rel (%p185) target = $region36
        $region35: #{tpu_custom_call.1} parent=31 // pred_region
          %s188 = sand.u32 %s28, 1
          %s189 = scalar_lea.sflag [#allocation4], %s188
          %s190 = sand.u32 %s28, 1
          %s191 = smul.addr %s190, 64
          %s192 = scalar_lea.vmem [#allocation3], %s191
          %194 = vsyncadd %s189, 0
          %s195 = smul.addr %s18, 8
          %s196 = smul.addr %s195, 8
          %s197 = scalar_lea.hbm %s0, %s196
          %s198 = sshll.u32 %s197, 4
          %s199 = int_to_ptr.hbm [resolvable:$true] %s198
          %s200 = sshll.u32 %s192, 4
          %s201 = int_to_ptr.vmem [resolvable:$true] %s200
          %206 = dma.hbm_to_vmem [thread:$0]  %s199, 1024, %s201, %s189, 256, 256, 16
        $region36: #{tpu_custom_call.1} parent=31 // pred_fallthru
          _
      $region32: #{tpu_custom_call.1} parent=5 // pred_fallthru
        _
      %p207 = scmp.le.s32.totalorder 1, %s18
      %p208 = scmp.lt.s32.totalorder %s18, 3
      %p209 = pnand %p207, %p208
      %p210 = pneg %p209
      // Predicated region
      $region37: #{tpu_custom_call.1} parent=5 // pred_check
        _
      $region38: #{tpu_custom_call.1} parent=5 // pred_check_branch
        %212 = sbr.rel (%p209) target = $region40
      $region39: #{tpu_custom_call.1} parent=5 // pred_region
        %s213 = ssub.s32 %s18, 1
        %s214 = sand.u32 %s31, 1
        %s215 = scalar_lea.sflag [#allocation4], %s214
        %s216 = sand.u32 %s31, 1
        %s217 = smul.addr %s216, 64
        %s218 = scalar_lea.vmem [#allocation3], %s217
        // Predicated region
        $region41: #{tpu_custom_call.1} parent=39 // pred_check
          %p219 = pneg %p44
        $region42: #{tpu_custom_call.1} parent=39 // pred_check_branch
          %221 = sbr.rel (%p219) target = $region44
        $region43: #{tpu_custom_call.1} parent=39 // pred_region
          %223 = dma.done %s215, 1024
        $region44: #{tpu_custom_call.1} parent=39 // pred_fallthru
          _
        %s224 = sand.u32 %s31, 1
        %s225 = scalar_lea.sflag [#allocation4], %s224
        %s226 = sand.u32 %s31, 1
        %s227 = smul.addr %s226, 64
        %s228 = scalar_lea.vmem [#allocation3], %s227
        %p229 = pneg %p44
        %p230 = pneg %p41
        %p231 = pneg %p65
        %p232 = pneg %p62
        %p233 = pneg %p86
        %p234 = pneg %p83
        %p235 = pneg %p107
        %p236 = pneg %p104
        %p237 = pneg %p128
        %p238 = pneg %p125
        %p239 = pneg %p154
        %p240 = pneg %p151
        %s241 = sand.u32 %s141, 1
        %s242 = scalar_lea.sflag [#allocation5], %s241
        %s243 = sand.u32 %s141, 1
        %s244 = smul.addr %s243, 64
        %s245 = scalar_lea.vmem [#allocation6], %s244
        %v246 = vld [vmem:[%s218] sm:$0xff]
        %v247 = vld [vmem:[%s218 + $0x8] sm:$0xff]
        %v248 = vld [vmem:[%s218 + $0x10] sm:$0xff]
        %v249 = vld [vmem:[%s218 + $0x18] sm:$0xff]
        %v250 = vld [vmem:[%s218 + $0x20] sm:$0xff]
        %v251 = vld [vmem:[%s218 + $0x28] sm:$0xff]
        %v252 = vld [vmem:[%s218 + $0x30] sm:$0xff]
        %v253 = vld [vmem:[%s218 + $0x38] sm:$0xff]
        %v254 = vadd.f32 %v246, %v247
        %255 = vadd.xlane.f32.xlu0 %v254
        %v256 = vpop.xlane.xlu0 %255
        %v257 = vadd.f32 %v248, %v249
        %258 = vadd.xlane.f32.xlu0 %v257
        %v259 = vpop.xlane.xlu0 %258
        %v260 = vadd.f32 %v250, %v251
        %261 = vadd.xlane.f32.xlu0 %v260
        %v262 = vpop.xlane.xlu0 %261
        %v263 = vadd.f32 %v252, %v253
        %264 = vadd.xlane.f32.xlu0 %v263
        %v265 = vpop.xlane.xlu0 %264
        %v266 = vmul.f32 %v256, 0.00390625
        %v267 = vmul.f32 %v259, 0.00390625
        %v268 = vmul.f32 %v262, 0.00390625
        %v269 = vmul.f32 %v265, 0.00390625
        %v270 = vld [vmem:[%s1] sm:$0x3]
        %vm271 = vcmask 261120
        %v273 = vsel %vm271, %v270, 0
        %275 = vmatpush.msra.mxu0 0.0
        %276 = vmatpush.msra.mxu0 0.0
        %277 = vmatpush.msra.mxu0 0.0
        %278 = vmatpush.msra.mxu0 0.0
        %279 = vmatpush.msra.mxu0 0.0
        %280 = vmatpush.msra.mxu0 0.0
        %281 = vmatpush.msra.mxu0 0.0
        %282 = vmatpush.msra.mxu0 0.0
        %283 = vmatpush.msra.mxu0 0.0
        %284 = vmatpush.msra.mxu0 0.0
        %285 = vmatpush.msra.mxu0 0.0
        %286 = vmatpush.msra.mxu0 0.0
        %287 = vmatpush.msra.mxu0 %v269
        %288 = vmatpush.msra.mxu0 %v268
        %289 = vmatpush.msra.mxu0 %v267
        %290 = vmatpush.msra.mxu0 %v266
        %291 = vmatmul.f32.gmra.mxu0 %v273
        %v292 = vpop.f32.mrf.mxu0
        %v293 = vadd.f32 0.0, %v292
        %294 = vdwg.mxu0
        %vm295 = vcmp.ge.f32.partialorder %v293, 0.0
        %v296 = vmul.f32 %v293, 0.01
        %v297 = vsel %vm295, %v293, %v296
        %v298 = vld [vmem:[%s2] sm:$0xff]
        %v299 = vld [vmem:[%s2 + $0x8] sm:$0xff]
        %v300 = vld [vmem:[%s2 + $0x10] sm:$0xff]
        %v301 = vld [vmem:[%s2 + $0x18] sm:$0xff]
        %vm302 = vcmask 15360
        %v304 = vsel %vm302, %v298, 0
        %v307 = vsel %vm302, %v299, 0
        %v310 = vsel %vm302, %v300, 0
        %v313 = vsel %vm302, %v301, 0
        %vm315 = vcmask 1041408
        %v317 = vsel %vm315, %v297, 0
        %319 = vmatpush.msra.mxu0 0.0
        %320 = vmatpush.msra.mxu0 0.0
        %321 = vmatpush.msra.mxu0 0.0
        %322 = vmatpush.msra.mxu0 0.0
        %323 = vmatpush.msra.mxu0 0.0
        %324 = vmatpush.msra.mxu0 0.0
        %325 = vmatpush.msra.mxu0 0.0
        %326 = vmatpush.msra.mxu0 0.0
        %327 = vmatpush.msra.mxu0 0.0
        %328 = vmatpush.msra.mxu0 0.0
        %329 = vmatpush.msra.mxu0 0.0
        %330 = vmatpush.msra.mxu0 0.0
        %331 = vmatpush.msra.mxu0 0.0
        %332 = vmatpush.msra.mxu0 0.0
        %333 = vmatpush.msra.mxu0 0.0
        %334 = vmatpush.msra.mxu0 %v317
        %335 = vmatmul.f32.gmra.mxu0 %v304
        %v336 = vpop.f32.mrf.mxu0
        %v337 = vadd.f32 0.0, %v336
        %338 = vmatmul.f32.gmra.mxu0 %v307
        %v339 = vpop.f32.mrf.mxu0
        %v340 = vadd.f32 0.0, %v339
        %341 = vmatmul.f32.gmra.mxu0 %v310
        %v342 = vpop.f32.mrf.mxu0
        %v343 = vadd.f32 0.0, %v342
        %344 = vmatmul.f32.gmra.mxu0 %v313
        %v345 = vpop.f32.mrf.mxu0
        %v346 = vadd.f32 0.0, %v345
        %347 = vdwg.mxu0
        %v348 = vxor.u32 %v337, 2147483648
        %v349 = vxor.u32 %v340, 2147483648
        %v350 = vxor.u32 %v343, 2147483648
        %v351 = vxor.u32 %v346, 2147483648
        %v352 = vmul.f32 %v348, 1.442695
        %v353 = vpow.pop %v352
        %v354 = vmul.f32 %v349, 1.442695
        %v355 = vpow.pop %v354
        %v356 = vmul.f32 %v350, 1.442695
        %v357 = vpow.pop %v356
        %v358 = vmul.f32 %v351, 1.442695
        %v359 = vpow.pop %v358
        %v360 = vadd.f32 %v353, 1.0
        %v361 = vadd.f32 %v355, 1.0
        %v362 = vadd.f32 %v357, 1.0
        %v363 = vadd.f32 %v359, 1.0
        %v364 = vrcp.pop %v360
        %v365 = vmul.f32 %v360, %v364
        %v366 = vsub.f32 1.0, %v365
        %v367 = vmul.f32 %v364, %v366
        %v368 = vadd.f32 %v364, %v367
        %vm369 = vweird.f32 %v360
        %vm370 = vweird.f32 %v364
        %vm371 = vmor %vm369, %vm370
        %v372 = vsel %vm371, %v364, %v368
        %v373 = vand.u32 2147483647, %v360
        %vm374 = vcmp.eq.f32.partialorder %v373, 8.507059e+37
        %v375 = vand.u32 %v360, 2147483648
        %v376 = vor.u32 1.1754944e-38, %v375
        %v377 = vsel %vm374, %v376, %v372
        %v378 = vmul.f32 1.0, %v377
        %v379 = vrcp.pop %v361
        %v380 = vmul.f32 %v361, %v379
        %v381 = vsub.f32 1.0, %v380
        %v382 = vmul.f32 %v379, %v381
        %v383 = vadd.f32 %v379, %v382
        %vm384 = vweird.f32 %v361
        %vm385 = vweird.f32 %v379
        %vm386 = vmor %vm384, %vm385
        %v387 = vsel %vm386, %v379, %v383
        %v388 = vand.u32 2147483647, %v361
        %vm389 = vcmp.eq.f32.partialorder %v388, 8.507059e+37
        %v390 = vand.u32 %v361, 2147483648
        %v391 = vor.u32 1.1754944e-38, %v390
        %v392 = vsel %vm389, %v391, %v387
        %v393 = vmul.f32 1.0, %v392
        %v394 = vrcp.pop %v362
        %v395 = vmul.f32 %v362, %v394
        %v396 = vsub.f32 1.0, %v395
        %v397 = vmul.f32 %v394, %v396
        %v398 = vadd.f32 %v394, %v397
        %vm399 = vweird.f32 %v362
        %vm400 = vweird.f32 %v394
        %vm401 = vmor %vm399, %vm400
        %v402 = vsel %vm401, %v394, %v398
        %v403 = vand.u32 2147483647, %v362
        %vm404 = vcmp.eq.f32.partialorder %v403, 8.507059e+37
        %v405 = vand.u32 %v362, 2147483648
        %v406 = vor.u32 1.1754944e-38, %v405
        %v407 = vsel %vm404, %v406, %v402
        %v408 = vmul.f32 1.0, %v407
        %v409 = vrcp.pop %v363
        %v410 = vmul.f32 %v363, %v409
        %v411 = vsub.f32 1.0, %v410
        %v412 = vmul.f32 %v409, %v411
        %v413 = vadd.f32 %v409, %v412
        %vm414 = vweird.f32 %v363
        %vm415 = vweird.f32 %v409
        %vm416 = vmor %vm414, %vm415
        %v417 = vsel %vm416, %v409, %v413
        %v418 = vand.u32 2147483647, %v363
        %vm419 = vcmp.eq.f32.partialorder %v418, 8.507059e+37
        %v420 = vand.u32 %v363, 2147483648
        %v421 = vor.u32 1.1754944e-38, %v420
        %v422 = vsel %vm419, %v421, %v417
        %v423 = vmul.f32 1.0, %v422
        %v424 = vld [vmem:[%s3] sm:$0xff]
        %v425 = vld [vmem:[%s3 + $0x8] sm:$0xff]
        %v426 = vld [vmem:[%s3 + $0x10] sm:$0xff]
        %v427 = vld [vmem:[%s3 + $0x18] sm:$0xff]
        %429 = vset.pattern.permute.xlu0 0
        %430 = vperm.xlu0 %429, %v424
        %v431 = vpop.permute.xlu0 %430
        %434 = vset.pattern.permute.xlu0 0
        %435 = vperm.xlu0 %434, %v425
        %v436 = vpop.permute.xlu0 %435
        %439 = vset.pattern.permute.xlu0 0
        %440 = vperm.xlu0 %439, %v426
        %v441 = vpop.permute.xlu0 %440
        %444 = vset.pattern.permute.xlu0 0
        %445 = vperm.xlu0 %444, %v427
        %v446 = vpop.permute.xlu0 %445
        %v448 = vmul.f32 %v246, %v431
        %v449 = vmul.f32 %v247, %v431
        %v450 = vmul.f32 %v248, %v436
        %v451 = vmul.f32 %v249, %v436
        %v452 = vmul.f32 %v250, %v441
        %v453 = vmul.f32 %v251, %v441
        %v454 = vmul.f32 %v252, %v446
        %v455 = vmul.f32 %v253, %v446
        %v456 = vadd.f32 %v448, %v450
        %v457 = vadd.f32 %v456, %v452
        %v458 = vadd.f32 %v457, %v454
        %v459 = vrot.slane %v458, 4
        %v460 = vadd.f32 %v458, %v459
        %v461 = vrot.slane %v460, 2
        %v462 = vadd.f32 %v460, %v461
        %v463 = vrot.slane %v462, 1
        %v464 = vadd.f32 %v462, %v463
        %v465 = vadd.f32 %v449, %v451
        %v466 = vadd.f32 %v465, %v453
        %v467 = vadd.f32 %v466, %v455
        %v468 = vrot.slane %v467, 4
        %v469 = vadd.f32 %v467, %v468
        %v470 = vrot.slane %v469, 2
        %v471 = vadd.f32 %v469, %v470
        %v472 = vrot.slane %v471, 1
        %v473 = vadd.f32 %v471, %v472
        %s474 = sld [smem:[#allocation2]]
        %v475 = vstv %s474
        %v476 = vadd.f32 %v464, %v475
        %v477 = vadd.f32 %v473, %v475
        %v478 = vxor.u32 %v476, 2147483648
        %v479 = vxor.u32 %v477, 2147483648
        %v480 = vmul.f32 %v478, 1.442695
        %v481 = vpow.pop %v480
        %v482 = vmul.f32 %v479, 1.442695
        %v483 = vpow.pop %v482
        %v484 = vadd.f32 %v481, 1.0
        %v485 = vadd.f32 %v483, 1.0
        %v486 = vrcp.pop %v484
        %v487 = vmul.f32 %v484, %v486
        %v488 = vsub.f32 1.0, %v487
        %v489 = vmul.f32 %v486, %v488
        %v490 = vadd.f32 %v486, %v489
        %vm491 = vweird.f32 %v484
        %vm492 = vweird.f32 %v486
        %vm493 = vmor %vm491, %vm492
        %v494 = vsel %vm493, %v486, %v490
        %v495 = vand.u32 2147483647, %v484
        %vm496 = vcmp.eq.f32.partialorder %v495, 8.507059e+37
        %v497 = vand.u32 %v484, 2147483648
        %v498 = vor.u32 1.1754944e-38, %v497
        %v499 = vsel %vm496, %v498, %v494
        %v500 = vmul.f32 1.0, %v499
        %v501 = vrcp.pop %v485
        %v502 = vmul.f32 %v485, %v501
        %v503 = vsub.f32 1.0, %v502
        %v504 = vmul.f32 %v501, %v503
        %v505 = vadd.f32 %v501, %v504
        %vm506 = vweird.f32 %v485
        %vm507 = vweird.f32 %v501
        %vm508 = vmor %vm506, %vm507
        %v509 = vsel %vm508, %v501, %v505
        %v510 = vand.u32 2147483647, %v485
        %vm511 = vcmp.eq.f32.partialorder %v510, 8.507059e+37
        %v512 = vand.u32 %v485, 2147483648
        %v513 = vor.u32 1.1754944e-38, %v512
        %v514 = vsel %vm511, %v513, %v509
        %v515 = vmul.f32 1.0, %v514
        %517 = vset.pattern.permute.xlu0 0
        %518 = vperm.xlu0 %517, %v378
        %v519 = vpop.permute.xlu0 %518
        %522 = vset.pattern.permute.xlu0 0
        %523 = vperm.xlu0 %522, %v393
        %v524 = vpop.permute.xlu0 %523
        %527 = vset.pattern.permute.xlu0 0
        %528 = vperm.xlu0 %527, %v408
        %v529 = vpop.permute.xlu0 %528
        %532 = vset.pattern.permute.xlu0 0
        %533 = vperm.xlu0 %532, %v423
        %v534 = vpop.permute.xlu0 %533
        %v536 = vadd.f32 %v519, %v500
        %v537 = vadd.f32 %v519, %v515
        %v538 = vadd.f32 %v524, %v500
        %v539 = vadd.f32 %v524, %v515
        %v540 = vadd.f32 %v529, %v500
        %v541 = vadd.f32 %v529, %v515
        %v542 = vadd.f32 %v534, %v500
        %v543 = vadd.f32 %v534, %v515
        %v544 = vmul.f32 %v246, %v536
        %v545 = vmul.f32 %v247, %v537
        %v546 = vmul.f32 %v248, %v538
        %v547 = vmul.f32 %v249, %v539
        %v548 = vmul.f32 %v250, %v540
        %v549 = vmul.f32 %v251, %v541
        %v550 = vmul.f32 %v252, %v542
        %v551 = vmul.f32 %v253, %v543
        %552 = vst [vmem:[%s245] sm:$0xff] %v544
        %553 = vst [vmem:[%s245 + $0x8] sm:$0xff] %v545
        %554 = vst [vmem:[%s245 + $0x10] sm:$0xff] %v546
        %555 = vst [vmem:[%s245 + $0x18] sm:$0xff] %v547
        %556 = vst [vmem:[%s245 + $0x20] sm:$0xff] %v548
        %557 = vst [vmem:[%s245 + $0x28] sm:$0xff] %v549
        %558 = vst [vmem:[%s245 + $0x30] sm:$0xff] %v550
        %559 = vst [vmem:[%s245 + $0x38] sm:$0xff] %v551
        %s560 = sand.u32 %s141, 1
        %s561 = scalar_lea.sflag [#allocation5], %s560
        %s562 = sand.u32 %s141, 1
        %s563 = smul.addr %s562, 64
        %s564 = scalar_lea.vmem [#allocation6], %s563
        // Predicated region
        $region45: #{tpu_custom_call.1} parent=39 // pred_check
          %p565 = pneg %p151
        $region46: #{tpu_custom_call.1} parent=39 // pred_check_branch
          %567 = sbr.rel (%p565) target = $region48
        $region47: #{tpu_custom_call.1} parent=39 // pred_region
          %569 = vsyncadd %s561, 0
          %s570 = smul.addr %s23, 8
          %s571 = smul.addr %s570, 8
          %s572 = scalar_lea.hbm %s5, %s571
          %s573 = sshll.u32 %s564, 4
          %s574 = int_to_ptr.vmem [resolvable:$true] %s573
          %s575 = sshll.u32 %s572, 4
          %s576 = int_to_ptr.hbm [resolvable:$true] %s575
          %581 = dma.vmem_to_hbm [thread:$0]  %s574, 1024, %s576, %s561, 256, 256, 16
        $region48: #{tpu_custom_call.1} parent=39 // pred_fallthru
          _
      $region40: #{tpu_custom_call.1} parent=5 // pred_fallthru
        _
      %p582 = scmp.le.s32.totalorder 2, %s18
      // Predicated region
      $region49: #{tpu_custom_call.1} parent=5 // pred_check
        %p583 = pneg %p582
      $region50: #{tpu_custom_call.1} parent=5 // pred_check_branch
        %585 = sbr.rel (%p583) target = $region52
      $region51: #{tpu_custom_call.1} parent=5 // pred_region
        %s586 = ssub.s32 %s18, 2
        // Predicated region
        $region53: #{tpu_custom_call.1} parent=51 // pred_check
          %p587 = pneg %p157
        $region54: #{tpu_custom_call.1} parent=51 // pred_check_branch
          %589 = sbr.rel (%p587) target = $region56
        $region55: #{tpu_custom_call.1} parent=51 // pred_region
          %s590 = sand.u32 %s142, 1
          %s591 = scalar_lea.sflag [#allocation5], %s590
          %s592 = sand.u32 %s142, 1
          %s593 = smul.addr %s592, 64
          %s594 = scalar_lea.vmem [#allocation6], %s593
          %596 = dma.done %s591, 1024
        $region56: #{tpu_custom_call.1} parent=51 // pred_fallthru
          _
      $region52: #{tpu_custom_call.1} parent=5 // pred_fallthru
        _
    $region6: #{tpu_custom_call.1} parent=1 // loop_footer
      %s22 = sadd.s32 1, %s18
    $region7: #{tpu_custom_call.1} parent=1 // loop_footer_branch
      %17 = sbr.rel target = $region3
    $region8: #{tpu_custom_call.1} parent=1 // loop_exit
      _
    %597 = vsyncpa [#allocation4], 1
    %s598 = scalar_lea.sflag [#allocation4], 1
    %599 = vsyncpa %s598, 1
    %600 = vsyncpa [#allocation5], 1
    %s601 = scalar_lea.sflag [#allocation5], 1
    %602 = vsyncpa %s601, 1

</llo_original>
